<compile_context>
chip_gen: v6e
topology: v6e:2x2x1
jax: 0.10.0
libtpu: 0.0.40
codegen_flags: <defaults>
</compile_context>

<pallas_src>
import math

import jax
import jax.numpy as jnp
from jax.experimental import pallas as pl
from jax.experimental.pallas import tpu as pltpu

STATE_DIM = 60
HIDDEN = 256
ACTION_DIM = 4
ACTION_DIM_PAD = 128   # lane-dense output stores
MAX_TILE_B = 512       # amortizes the ~0.35 us per-grid-step overhead


def actor_kernel(x_ref, w1_ref, b1_ref, w2_ref, b2_ref, w3_ref, b3_ref, o_ref):
    # Cast x to bf16 in-kernel (VPU work hidden under DMA); K=60 is fine on MXU.
    x = x_ref[...].astype(jnp.bfloat16)
    # Layer 1: (TB, 60) @ (60, 256) + (1, 256), ReLU     (bf16 in, f32 acc)
    h1 = jnp.dot(x, w1_ref[...], preferred_element_type=jnp.float32)
    h1 = jnp.maximum(h1 + b1_ref[...], 0.0).astype(jnp.bfloat16)
    # Layer 2: (TB, 256) @ (256, 256) + (1, 256), ReLU
    h2 = jnp.dot(h1, w2_ref[...], preferred_element_type=jnp.float32)
    h2 = jnp.maximum(h2 + b2_ref[...], 0.0).astype(jnp.bfloat16)
    # Layer 3: (TB, 256) @ (256, 128) + (1, 128), tanh in f32, bf16 store
    h3 = jnp.dot(h2, w3_ref[...], preferred_element_type=jnp.float32)
    o_ref[...] = jnp.tanh(h3 + b3_ref[...]).astype(jnp.bfloat16)


def pack_actor_params(w1, b1, w2, b2, w3, b3):
    """One-time repacking of f32 params into the kernel's resident layout.

    w*: (in, out) f32; b*: (1, out) f32.  Returns bf16 weights (layer-3 output
    padded 4 -> 128 lanes) and f32 biases (layer-3 bias padded to 128 lanes).
    Call once at init; do NOT put this in the per-forward path.
    """
    w1_bf = w1.astype(jnp.bfloat16)                                  # (60, 256)
    w2_bf = w2.astype(jnp.bfloat16)                                  # (256, 256)
    w3_bf = (
        jnp.zeros((HIDDEN, ACTION_DIM_PAD), jnp.float32)
        .at[:, :ACTION_DIM].set(w3)
        .astype(jnp.bfloat16)
    )                                                                # (256, 128)
    b3_p = (
        jnp.zeros((1, ACTION_DIM_PAD), jnp.float32)
        .at[:, :ACTION_DIM].set(b3)
    )                                                                # (1, 128)
    return w1_bf, b1, w2_bf, b2, w3_bf, b3_p


def _choose_tile_b(batch):
    """Largest power-of-two tile <= MAX_TILE_B keeping >= 2 grid steps when
    possible (so the 'parallel' axis can split across v7x's two TensorCores),
    floored at 8 rows (sublane alignment)."""
    return min(MAX_TILE_B, max(8, pl.next_power_of_2(batch) // 2))


@jax.jit
def actor_forward(x, w1_bf, b1, w2_bf, b2, w3_bf, b3_p):
    """x: (B, 60) f32; packed params from pack_actor_params().

    Returns (B, 4) float32, matching the PyTorch Actor forward.
    """
    batch = x.shape[0]
    tile_b = _choose_tile_b(batch)
    batch_pad = pl.cdiv(batch, tile_b) * tile_b

    # Single-pass batch padding (no feature padding needed).
    if batch_pad != batch:
        x = jnp.zeros((batch_pad, STATE_DIM), x.dtype).at[:batch].set(x)

    grid = (batch_pad // tile_b,)

    # weights/biases: constant index_map -> DMA'd once, resident across tiles.
    const2d = lambda shape: pl.BlockSpec(shape, lambda i: (0, 0))

    out = pl.pallas_call(
        actor_kernel,
        out_shape=jax.ShapeDtypeStruct((batch_pad, ACTION_DIM_PAD), jnp.bfloat16),
        grid=grid,
        in_specs=[
            pl.BlockSpec((tile_b, STATE_DIM), lambda i: (i, 0)),   # x tile (f32)
            const2d((STATE_DIM, HIDDEN)),                          # w1 (bf16)
            const2d((1, HIDDEN)),                                  # b1 (f32)
            const2d((HIDDEN, HIDDEN)),                             # w2 (bf16)
            const2d((1, HIDDEN)),                                  # b2 (f32)
            const2d((HIDDEN, ACTION_DIM_PAD)),                     # w3 (bf16)
            const2d((1, ACTION_DIM_PAD)),                          # b3 (f32)
        ],
        out_specs=pl.BlockSpec((tile_b, ACTION_DIM_PAD), lambda i: (i, 0)),
        compiler_params=pltpu.CompilerParams(
            dimension_semantics=("parallel",),
        ),
    )(x, w1_bf, b1, w2_bf, b2, w3_bf, b3_p)

    # Slice the 4 real action columns and upcast (tiny, fused by XLA).
    return out[:batch, :ACTION_DIM].astype(jnp.float32)


def init_linear(key, in_features, out_features):
    """PyTorch nn.Linear default init: U(-1/sqrt(in), 1/sqrt(in)).

    Weight returned as (in_features, out_features) (transposed vs. PyTorch),
    bias as (1, out_features) for in-kernel broadcasting.
    """
    kw, kb = jax.random.split(key)
    bound = 1.0 / math.sqrt(in_features)
    w = jax.random.uniform(
        kw, (in_features, out_features), jnp.float32, minval=-bound, maxval=bound
    )
    b = jax.random.uniform(
        kb, (1, out_features), jnp.float32, minval=-bound, maxval=bound
    )
    return w, b


if __name__ == "__main__":
    key = jax.random.PRNGKey(0)
    k_x, k1, k2, k3 = jax.random.split(key, 4)

    batch = 256  # two batch tiles -> exercises the grid / megacore path

    x = jax.random.normal(k_x, (batch, STATE_DIM), jnp.float32)
    w1, b1 = init_linear(k1, STATE_DIM, HIDDEN)
    w2, b2 = init_linear(k2, HIDDEN, HIDDEN)
    w3, b3 = init_linear(k3, HIDDEN, ACTION_DIM)

    # One-time parameter packing (outside the per-forward path).
    packed = pack_actor_params(w1, b1, w2, b2, w3, b3)
    packed = jax.block_until_ready(packed)

    out = actor_forward(x, *packed)
    out = jax.block_until_ready(out)

    # Reference in plain JAX, full f32 (same math as the PyTorch forward).
    ref = jnp.maximum(x @ w1 + b1, 0.0)
    ref = jnp.maximum(ref @ w2 + b2, 0.0)
    ref = jnp.tanh(ref @ w3 + b3)

    assert out.shape == (batch, ACTION_DIM)
    # bf16 weights/activations/output with f32 accumulation: loosened tolerance.
    assert jnp.allclose(out, ref, atol=3e-2, rtol=3e-2), (
        float(jnp.max(jnp.abs(out - ref)))
    )

    print("KERNEL_OK")
</pallas_src>

<mosaic_0001>
module attributes {stable_mosaic.version = 11 : i64} {
  func.func @actor_kernel(%arg0: i32, %arg1: memref<128x60xf32, #tpu.memory_space<vmem>>, %arg2: memref<60x256xbf16, #tpu.memory_space<vmem>>, %arg3: memref<1x256xf32, #tpu.memory_space<vmem>>, %arg4: memref<256x256xbf16, #tpu.memory_space<vmem>>, %arg5: memref<1x256xf32, #tpu.memory_space<vmem>>, %arg6: memref<256x128xbf16, #tpu.memory_space<vmem>>, %arg7: memref<1x128xf32, #tpu.memory_space<vmem>>, %arg8: memref<128x128xbf16, #tpu.memory_space<vmem>>) attributes {dimension_semantics = [#tpu.dimension_semantics<parallel>], iteration_bounds = array<i64: 2>, scalar_prefetch = 0 : i64, scratch_operands = 0 : i64, tpu.core_type = #tpu.core_type<tc>, window_params = [{transform_indices = @transform_0, window_bounds = array<i64: 128, 60>}, {pipeline_mode = #tpu.pipeline_mode<synchronous>, transform_indices = @transform_1, window_bounds = array<i64: 60, 256>}, {pipeline_mode = #tpu.pipeline_mode<synchronous>, transform_indices = @transform_2, window_bounds = array<i64: 1, 256>}, {pipeline_mode = #tpu.pipeline_mode<synchronous>, transform_indices = @transform_3, window_bounds = array<i64: 256, 256>}, {pipeline_mode = #tpu.pipeline_mode<synchronous>, transform_indices = @transform_4, window_bounds = array<i64: 1, 256>}, {pipeline_mode = #tpu.pipeline_mode<synchronous>, transform_indices = @transform_5, window_bounds = array<i64: 256, 128>}, {pipeline_mode = #tpu.pipeline_mode<synchronous>, transform_indices = @transform_6, window_bounds = array<i64: 1, 128>}, {transform_indices = @transform_7, window_bounds = array<i64: 128, 128>}]} {
    %c0 = arith.constant 0 : index
    %c0_0 = arith.constant 0 : index
    %0 = vector.load %arg1[%c0, %c0_0] : memref<128x60xf32, #tpu.memory_space<vmem>>, vector<128x60xf32>
    %1 = arith.truncf %0 : vector<128x60xf32> to vector<128x60xbf16>
    %c0_1 = arith.constant 0 : index
    %c0_2 = arith.constant 0 : index
    %2 = vector.load %arg2[%c0_1, %c0_2] : memref<60x256xbf16, #tpu.memory_space<vmem>>, vector<60x256xbf16>
    %cst = arith.constant dense<0.000000e+00> : vector<128x256xf32>
    %3 = tpu.matmul %1, %2, %cst {dimension_numbers = #tpu.dot_dimension_numbers<[1], [0], [0], [1], [0, 0, 1, 1], [], []>} : vector<128x60xbf16>, vector<60x256xbf16>, vector<128x256xf32> -> vector<128x256xf32>
    %c0_3 = arith.constant 0 : index
    %c0_4 = arith.constant 0 : index
    %4 = vector.load %arg3[%c0_3, %c0_4] : memref<1x256xf32, #tpu.memory_space<vmem>>, vector<1x256xf32>
    %5 = vector.broadcast %4 : vector<1x256xf32> to vector<128x256xf32>
    %6 = arith.addf %3, %5 : vector<128x256xf32>
    %cst_5 = arith.constant 0.000000e+00 : f32
    %7 = vector.broadcast %cst_5 : f32 to vector<128x256xf32>
    %8 = arith.maximumf %6, %7 : vector<128x256xf32>
    %9 = arith.truncf %8 : vector<128x256xf32> to vector<128x256xbf16>
    %c0_6 = arith.constant 0 : index
    %c0_7 = arith.constant 0 : index
    %10 = vector.load %arg4[%c0_6, %c0_7] : memref<256x256xbf16, #tpu.memory_space<vmem>>, vector<256x256xbf16>
    %cst_8 = arith.constant dense<0.000000e+00> : vector<128x256xf32>
    %11 = tpu.matmul %9, %10, %cst_8 {dimension_numbers = #tpu.dot_dimension_numbers<[1], [0], [0], [1], [0, 0, 1, 1], [], []>} : vector<128x256xbf16>, vector<256x256xbf16>, vector<128x256xf32> -> vector<128x256xf32>
    %c0_9 = arith.constant 0 : index
    %c0_10 = arith.constant 0 : index
    %12 = vector.load %arg5[%c0_9, %c0_10] : memref<1x256xf32, #tpu.memory_space<vmem>>, vector<1x256xf32>
    %13 = vector.broadcast %12 : vector<1x256xf32> to vector<128x256xf32>
    %14 = arith.addf %11, %13 : vector<128x256xf32>
    %cst_11 = arith.constant 0.000000e+00 : f32
    %15 = vector.broadcast %cst_11 : f32 to vector<128x256xf32>
    %16 = arith.maximumf %14, %15 : vector<128x256xf32>
    %17 = arith.truncf %16 : vector<128x256xf32> to vector<128x256xbf16>
    %c0_12 = arith.constant 0 : index
    %c0_13 = arith.constant 0 : index
    %18 = vector.load %arg6[%c0_12, %c0_13] : memref<256x128xbf16, #tpu.memory_space<vmem>>, vector<256x128xbf16>
    %cst_14 = arith.constant dense<0.000000e+00> : vector<128x128xf32>
    %19 = tpu.matmul %17, %18, %cst_14 {dimension_numbers = #tpu.dot_dimension_numbers<[1], [0], [0], [1], [0, 0, 1, 1], [], []>} : vector<128x256xbf16>, vector<256x128xbf16>, vector<128x128xf32> -> vector<128x128xf32>
    %c0_15 = arith.constant 0 : index
    %c0_16 = arith.constant 0 : index
    %20 = vector.load %arg7[%c0_15, %c0_16] : memref<1x128xf32, #tpu.memory_space<vmem>>, vector<1x128xf32>
    %21 = vector.broadcast %20 : vector<1x128xf32> to vector<128x128xf32>
    %22 = arith.addf %19, %21 : vector<128x128xf32>
    %23 = math.tanh %22 : vector<128x128xf32>
    %24 = arith.truncf %23 : vector<128x128xf32> to vector<128x128xbf16>
    %c0_17 = arith.constant 0 : index
    %c0_18 = arith.constant 0 : index
    %25 = vector.load %arg8[%c0_17, %c0_18] : memref<128x128xbf16, #tpu.memory_space<vmem>>, vector<128x128xbf16>
    tpu.vector_store %arg8[%c0_17, %c0_18], %24 {strides = array<i32>} : memref<128x128xbf16, #tpu.memory_space<vmem>>, vector<128x128xbf16>,
    return
  }
  func.func @transform_0(%arg0: i32) -> (i32, i32) {
    %c0_i32 = arith.constant 0 : i32
    %c0_i32_0 = arith.constant 0 : i32
    return %arg0, %c0_i32 : i32, i32
  }
  func.func @transform_1(%arg0: i32) -> (i32, i32) {
    %c0_i32 = arith.constant 0 : i32
    %c0_i32_0 = arith.constant 0 : i32
    %c0_i32_1 = arith.constant 0 : i32
    return %c0_i32, %c0_i32_0 : i32, i32
  }
  func.func @transform_2(%arg0: i32) -> (i32, i32) {
    %c0_i32 = arith.constant 0 : i32
    %c0_i32_0 = arith.constant 0 : i32
    %c0_i32_1 = arith.constant 0 : i32
    return %c0_i32, %c0_i32_0 : i32, i32
  }
  func.func @transform_3(%arg0: i32) -> (i32, i32) {
    %c0_i32 = arith.constant 0 : i32
    %c0_i32_0 = arith.constant 0 : i32
    %c0_i32_1 = arith.constant 0 : i32
    return %c0_i32, %c0_i32_0 : i32, i32
  }
  func.func @transform_4(%arg0: i32) -> (i32, i32) {
    %c0_i32 = arith.constant 0 : i32
    %c0_i32_0 = arith.constant 0 : i32
    %c0_i32_1 = arith.constant 0 : i32
    return %c0_i32, %c0_i32_0 : i32, i32
  }
  func.func @transform_5(%arg0: i32) -> (i32, i32) {
    %c0_i32 = arith.constant 0 : i32
    %c0_i32_0 = arith.constant 0 : i32
    %c0_i32_1 = arith.constant 0 : i32
    return %c0_i32, %c0_i32_0 : i32, i32
  }
  func.func @transform_6(%arg0: i32) -> (i32, i32) {
    %c0_i32 = arith.constant 0 : i32
    %c0_i32_0 = arith.constant 0 : i32
    %c0_i32_1 = arith.constant 0 : i32
    return %c0_i32, %c0_i32_0 : i32, i32
  }
  func.func @transform_7(%arg0: i32) -> (i32, i32) {
    %c0_i32 = arith.constant 0 : i32
    %c0_i32_0 = arith.constant 0 : i32
    return %arg0, %c0_i32 : i32, i32
  }
}

</mosaic_0001>

<llo_original>
// kernel: actor_forward.1
$region0: #{actor_forward.1}
  #allocation0 [shape = 'u32[]', space=smem, size = 0x4, offset = 0x4, fixed_abs, tag = 'smem constant byte address 0x4 - core index']
  #allocation1 [shape = 'u32[144,128]{1,0:T(1,128)}', space=vmem, size = 0x12000, scoped, tag = 'internal scratch']
  %s0 = inlined_call_operand.vmem [shape: f32[256,60], index: 0, kind: input, shape index: {}]
  %s1 = inlined_call_operand.hbm [shape: bf16[60,256], index: 1, kind: input, shape index: {}]
  %s2 = inlined_call_operand.vmem [shape: f32[1,256], index: 2, kind: input, shape index: {}]
  %s3 = inlined_call_operand.vmem [shape: bf16[256,256], index: 3, kind: input, shape index: {}]
  %s4 = inlined_call_operand.vmem [shape: f32[1,256], index: 4, kind: input, shape index: {}]
  %s5 = inlined_call_operand.vmem [shape: bf16[256,128], index: 5, kind: input, shape index: {}]
  %s6 = inlined_call_operand.vmem [shape: f32[1,128], index: 6, kind: input, shape index: {}]
  %s7 = inlined_call_operand.vmem [shape: bf16[256,128], index: 7, kind: output, shape index: {}]
  %s8 = sld [smem:[#allocation0]]
  $region65: #{actor_forward.1} parent=0
    _
  %s10 = ssub.s32 1, %s8
  %s11 = scalar_select 0, %s10, %s8
  $region1: #{actor_forward.1} parent=0
    #allocation2 [shape = 'u8[32768]{0}', space=vmem, size = 0x8000, scoped, tag = 'input window, operand 1, single buffered']
    #allocation3 [shape = 's32[2]{0}', space=sflag, size = 0x8, scoped, tag = 'scoped memory for actor_forward.1']
    %12 = vsyncpa [#allocation3], 0
    loop: start=0, step=1, limit=4
    $region2: #{actor_forward.1} parent=1 // loop_pre_header
      _
    $region3: #{actor_forward.1} parent=1 // loop_header
      %s14 = sphi 0, %s18
      %p15 = scmp.ge.s32.totalorder %s14, 4
      %s24 = sphi 0, %s26
      %s27 = sphi 0, %s24
      %s28 = sphi 0, %s27
      %s44 = sphi 0, %s28
      %s48 = sphi 0, %s48
      %s50 = sphi 0, %s48
      %s51 = sphi 0, %s50
      %s65 = sphi 0, %s51
      %s69 = sphi 0, %s69
      %s71 = sphi 0, %s69
      %s72 = sphi 0, %s71
      %s86 = sphi 0, %s72
      %s90 = sphi 0, %s90
      %s92 = sphi 0, %s90
      %s93 = sphi 0, %s92
      %s107 = sphi 0, %s93
      %s111 = sphi 0, %s111
      %s113 = sphi 0, %s111
      %s114 = sphi 0, %s113
      %s128 = sphi 0, %s114
      %s132 = sphi 0, %s132
      %s134 = sphi 0, %s132
      %s135 = sphi 0, %s134
      %s149 = sphi 0, %s135
      %s153 = sphi 0, %s153
      %s155 = sphi 0, %s153
      %s156 = sphi 0, %s155
      %s170 = sphi 0, %s156
      %s176 = sphi 0, %s178
      %s179 = sphi 0, %s176
      %s180 = sphi 0, %s179
      %s196 = sphi 0, %s180
    $region4: #{actor_forward.1} parent=1 // loop_header_branch
      %17 = sbr.rel (%p15) target = $region8
    $region5: #{actor_forward.1} parent=1 // loop_body
      %s19 = ssub.s32 %s14, 1
      %s20 = ssub.s32 %s14, 2
      %s21 = sadd.s32 %s14, 1
      %s22 = ssub.s32 %s14, %s21
      %p23 = scmp.eq.s32.totalorder %s22, 0
      %s25 = sadd.s32 %s24, 1
      %s26 = scalar_select %p23, %s24, %s25
      %p29 = pneg %p23
      %p30 = scmp.eq.s32.totalorder %s14, 1
      %p31 = por %p29, %p30
      %p32 = scmp.ne.s32.totalorder %s24, %s27
      %p33 = scmp.eq.s32.totalorder %s14, 0
      %p34 = por %p32, %p33
      %p35 = scmp.ne.s32.totalorder %s24, %s27
      %p36 = scmp.eq.s32.totalorder %s19, 1
      %p37 = por %p35, %p36
      %p38 = scmp.ne.s32.totalorder %s27, %s28
      %p39 = scmp.eq.s32.totalorder %s19, 0
      %p40 = por %p38, %p39
      %p41 = scmp.ne.s32.totalorder %s27, %s28
      %p42 = scmp.eq.s32.totalorder %s20, 1
      %p43 = por %p41, %p42
      %p45 = scmp.ne.s32.totalorder %s28, %s44
      %p46 = scmp.eq.s32.totalorder %s20, 0
      %p47 = por %p45, %p46
      %s49 = sadd.s32 %s48, 1
      %p52 = scmp.eq.s32.totalorder %s14, 1
      %p53 = scmp.ne.s32.totalorder %s48, %s50
      %p54 = scmp.eq.s32.totalorder %s14, 0
      %p55 = por %p53, %p54
      %p56 = scmp.ne.s32.totalorder %s48, %s50
      %p57 = scmp.eq.s32.totalorder %s19, 1
      %p58 = por %p56, %p57
      %p59 = scmp.ne.s32.totalorder %s50, %s51
      %p60 = scmp.eq.s32.totalorder %s19, 0
      %p61 = por %p59, %p60
      %p62 = scmp.ne.s32.totalorder %s50, %s51
      %p63 = scmp.eq.s32.totalorder %s20, 1
      %p64 = por %p62, %p63
      %p66 = scmp.ne.s32.totalorder %s51, %s65
      %p67 = scmp.eq.s32.totalorder %s20, 0
      %p68 = por %p66, %p67
      %s70 = sadd.s32 %s69, 1
      %p73 = scmp.eq.s32.totalorder %s14, 1
      %p74 = scmp.ne.s32.totalorder %s69, %s71
      %p75 = scmp.eq.s32.totalorder %s14, 0
      %p76 = por %p74, %p75
      %p77 = scmp.ne.s32.totalorder %s69, %s71
      %p78 = scmp.eq.s32.totalorder %s19, 1
      %p79 = por %p77, %p78
      %p80 = scmp.ne.s32.totalorder %s71, %s72
      %p81 = scmp.eq.s32.totalorder %s19, 0
      %p82 = por %p80, %p81
      %p83 = scmp.ne.s32.totalorder %s71, %s72
      %p84 = scmp.eq.s32.totalorder %s20, 1
      %p85 = por %p83, %p84
      %p87 = scmp.ne.s32.totalorder %s72, %s86
      %p88 = scmp.eq.s32.totalorder %s20, 0
      %p89 = por %p87, %p88
      %s91 = sadd.s32 %s90, 1
      %p94 = scmp.eq.s32.totalorder %s14, 1
      %p95 = scmp.ne.s32.totalorder %s90, %s92
      %p96 = scmp.eq.s32.totalorder %s14, 0
      %p97 = por %p95, %p96
      %p98 = scmp.ne.s32.totalorder %s90, %s92
      %p99 = scmp.eq.s32.totalorder %s19, 1
      %p100 = por %p98, %p99
      %p101 = scmp.ne.s32.totalorder %s92, %s93
      %p102 = scmp.eq.s32.totalorder %s19, 0
      %p103 = por %p101, %p102
      %p104 = scmp.ne.s32.totalorder %s92, %s93
      %p105 = scmp.eq.s32.totalorder %s20, 1
      %p106 = por %p104, %p105
      %p108 = scmp.ne.s32.totalorder %s93, %s107
      %p109 = scmp.eq.s32.totalorder %s20, 0
      %p110 = por %p108, %p109
      %s112 = sadd.s32 %s111, 1
      %p115 = scmp.eq.s32.totalorder %s14, 1
      %p116 = scmp.ne.s32.totalorder %s111, %s113
      %p117 = scmp.eq.s32.totalorder %s14, 0
      %p118 = por %p116, %p117
      %p119 = scmp.ne.s32.totalorder %s111, %s113
      %p120 = scmp.eq.s32.totalorder %s19, 1
      %p121 = por %p119, %p120
      %p122 = scmp.ne.s32.totalorder %s113, %s114
      %p123 = scmp.eq.s32.totalorder %s19, 0
      %p124 = por %p122, %p123
      %p125 = scmp.ne.s32.totalorder %s113, %s114
      %p126 = scmp.eq.s32.totalorder %s20, 1
      %p127 = por %p125, %p126
      %p129 = scmp.ne.s32.totalorder %s114, %s128
      %p130 = scmp.eq.s32.totalorder %s20, 0
      %p131 = por %p129, %p130
      %s133 = sadd.s32 %s132, 1
      %p136 = scmp.eq.s32.totalorder %s14, 1
      %p137 = scmp.ne.s32.totalorder %s132, %s134
      %p138 = scmp.eq.s32.totalorder %s14, 0
      %p139 = por %p137, %p138
      %p140 = scmp.ne.s32.totalorder %s132, %s134
      %p141 = scmp.eq.s32.totalorder %s19, 1
      %p142 = por %p140, %p141
      %p143 = scmp.ne.s32.totalorder %s134, %s135
      %p144 = scmp.eq.s32.totalorder %s19, 0
      %p145 = por %p143, %p144
      %p146 = scmp.ne.s32.totalorder %s134, %s135
      %p147 = scmp.eq.s32.totalorder %s20, 1
      %p148 = por %p146, %p147
      %p150 = scmp.ne.s32.totalorder %s135, %s149
      %p151 = scmp.eq.s32.totalorder %s20, 0
      %p152 = por %p150, %p151
      %s154 = sadd.s32 %s153, 1
      %p157 = scmp.eq.s32.totalorder %s14, 1
      %p158 = scmp.ne.s32.totalorder %s153, %s155
      %p159 = scmp.eq.s32.totalorder %s14, 0
      %p160 = por %p158, %p159
      %p161 = scmp.ne.s32.totalorder %s153, %s155
      %p162 = scmp.eq.s32.totalorder %s19, 1
      %p163 = por %p161, %p162
      %p164 = scmp.ne.s32.totalorder %s155, %s156
      %p165 = scmp.eq.s32.totalorder %s19, 0
      %p166 = por %p164, %p165
      %p167 = scmp.ne.s32.totalorder %s155, %s156
      %p168 = scmp.eq.s32.totalorder %s20, 1
      %p169 = por %p167, %p168
      %p171 = scmp.ne.s32.totalorder %s156, %s170
      %p172 = scmp.eq.s32.totalorder %s20, 0
      %p173 = por %p171, %p172
      %s174 = ssub.s32 %s14, %s21
      %p175 = scmp.eq.s32.totalorder %s174, 0
      %s177 = sadd.s32 %s176, 1
      %s178 = scalar_select %p175, %s176, %s177
      %p181 = pneg %p175
      %p182 = scmp.eq.s32.totalorder %s14, 1
      %p183 = por %p181, %p182
      %p184 = scmp.ne.s32.totalorder %s176, %s179
      %p185 = scmp.eq.s32.totalorder %s14, 0
      %p186 = por %p184, %p185
      %p187 = scmp.ne.s32.totalorder %s176, %s179
      %p188 = scmp.eq.s32.totalorder %s19, 1
      %p189 = por %p187, %p188
      %p190 = scmp.ne.s32.totalorder %s179, %s180
      %p191 = scmp.eq.s32.totalorder %s19, 0
      %p192 = por %p190, %p191
      %p193 = scmp.ne.s32.totalorder %s179, %s180
      %p194 = scmp.eq.s32.totalorder %s20, 1
      %p195 = por %p193, %p194
      %p197 = scmp.ne.s32.totalorder %s180, %s196
      %p198 = scmp.eq.s32.totalorder %s20, 0
      %p199 = por %p197, %p198
      %p200 = scmp.le.s32.totalorder 1, %s14
      %p201 = scmp.lt.s32.totalorder %s14, 3
      %p202 = pnand %p200, %p201
      %p203 = pneg %p202
      // Predicated region
      $region9: #{actor_forward.1} parent=5 // pred_check
        _
      $region10: #{actor_forward.1} parent=5 // pred_check_branch
        %205 = sbr.rel (%p202) target = $region12
      $region11: #{actor_forward.1} parent=5 // pred_region
        %s206 = ssub.s32 %s14, 1
        // Predicated region
        $region13: #{actor_forward.1} parent=11 // pred_check
          %p207 = pneg %p61
        $region14: #{actor_forward.1} parent=11 // pred_check_branch
          %209 = sbr.rel (%p207) target = $region16
        $region15: #{actor_forward.1} parent=11 // pred_region
          %s211 = ssub.s32 1024, 1024
          %212 = vsyncadd [#allocation3], %s211
          %s213 = sshll.u32 [#allocation2], 4
          %s214 = int_to_ptr.vmem [resolvable:$true] %s213
          %219 = dma.hbm_to_vmem [thread:$0]  %s1, 1024, %s214, [#allocation3], 128, 128, 8
        $region16: #{actor_forward.1} parent=11 // pred_fallthru
          _
        // Predicated region
        $region17: #{actor_forward.1} parent=11 // pred_check
          %p220 = pneg %p82
        $region18: #{actor_forward.1} parent=11 // pred_check_branch
          %222 = sbr.rel (%p220) target = $region20
        $region19: #{actor_forward.1} parent=11 // pred_region
          _
        $region20: #{actor_forward.1} parent=11 // pred_fallthru
          _
        // Predicated region
        $region21: #{actor_forward.1} parent=11 // pred_check
          %p223 = pneg %p103
        $region22: #{actor_forward.1} parent=11 // pred_check_branch
          %225 = sbr.rel (%p223) target = $region24
        $region23: #{actor_forward.1} parent=11 // pred_region
          _
        $region24: #{actor_forward.1} parent=11 // pred_fallthru
          _
        // Predicated region
        $region25: #{actor_forward.1} parent=11 // pred_check
          %p226 = pneg %p124
        $region26: #{actor_forward.1} parent=11 // pred_check_branch
          %228 = sbr.rel (%p226) target = $region28
        $region27: #{actor_forward.1} parent=11 // pred_region
          _
        $region28: #{actor_forward.1} parent=11 // pred_fallthru
          _
        // Predicated region
        $region29: #{actor_forward.1} parent=11 // pred_check
          %p229 = pneg %p145
        $region30: #{actor_forward.1} parent=11 // pred_check_branch
          %231 = sbr.rel (%p229) target = $region32
        $region31: #{actor_forward.1} parent=11 // pred_region
          _
        $region32: #{actor_forward.1} parent=11 // pred_fallthru
          _
        // Predicated region
        $region33: #{actor_forward.1} parent=11 // pred_check
          %p232 = pneg %p166
        $region34: #{actor_forward.1} parent=11 // pred_check_branch
          %234 = sbr.rel (%p232) target = $region36
        $region35: #{actor_forward.1} parent=11 // pred_region
          _
        $region36: #{actor_forward.1} parent=11 // pred_fallthru
          _
      $region12: #{actor_forward.1} parent=5 // pred_fallthru
        _
      %p235 = scmp.lt.s32.totalorder %s14, 2
      // Predicated region
      $region37: #{actor_forward.1} parent=5 // pred_check
        %p236 = pneg %p235
      $region38: #{actor_forward.1} parent=5 // pred_check_branch
        %238 = sbr.rel (%p236) target = $region40
      $region39: #{actor_forward.1} parent=5 // pred_region
        // Predicated region
        $region41: #{actor_forward.1} parent=39 // pred_check
          %p239 = pneg %p34
        $region42: #{actor_forward.1} parent=39 // pred_check_branch
          %241 = sbr.rel (%p239) target = $region44
        $region43: #{actor_forward.1} parent=39 // pred_region
          %s242 = smul.u32 16, %s14
          %p243 = scmp.lt.s32.totalorder %s242, 31
          %s244 = scalar_select %p243, %s242, 31
          %s245 = smul.addr %s244, 8
          %s246 = scalar_lea.vmem %s0, %s245
          %s247 = smul.u32 16, %s14
        $region44: #{actor_forward.1} parent=39 // pred_fallthru
          _
      $region40: #{actor_forward.1} parent=5 // pred_fallthru
        _
      %p248 = scmp.le.s32.totalorder 1, %s14
      %p249 = scmp.lt.s32.totalorder %s14, 3
      %p250 = pnand %p248, %p249
      %p251 = pneg %p250
      // Predicated region
      $region45: #{actor_forward.1} parent=5 // pred_check
        _
      $region46: #{actor_forward.1} parent=5 // pred_check_branch
        %253 = sbr.rel (%p250) target = $region48
      $region47: #{actor_forward.1} parent=5 // pred_region
        %s254 = ssub.s32 %s14, 1
        // Predicated region
        $region49: #{actor_forward.1} parent=47 // pred_check
          %p255 = pneg %p61
        $region50: #{actor_forward.1} parent=47 // pred_check_branch
          %257 = sbr.rel (%p255) target = $region52
        $region51: #{actor_forward.1} parent=47 // pred_region
          %258 = dma.done [#allocation3], 1024
        $region52: #{actor_forward.1} parent=47 // pred_fallthru
          _
        %s259 = smul.u32 16, %s19
        %p260 = scmp.lt.s32.totalorder %s259, 31
        %s261 = scalar_select %p260, %s259, 31
        %s262 = smul.addr %s261, 8
        %s263 = scalar_lea.vmem %s0, %s262
        %p264 = pneg %p40
        %p265 = pneg %p37
        %p266 = pneg %p61
        %p267 = pneg %p58
        %p268 = pneg %p82
        %p269 = pneg %p79
        %p270 = pneg %p103
        %p271 = pneg %p100
        %p272 = pneg %p124
        %p273 = pneg %p121
        %p274 = pneg %p145
        %p275 = pneg %p142
        %p276 = pneg %p166
        %p277 = pneg %p163
        %p278 = pneg %p192
        %p279 = pneg %p189
        %s280 = smul.u32 16, %s19
        %p281 = scmp.lt.s32.totalorder %s280, 31
        %s282 = scalar_select %p281, %s280, 31
        %s283 = smul.addr %s282, 4
        %s284 = scalar_lea.vmem %s7, %s283
        %s285 = smul.u32 16, %s19
        %p286 = scmp.lt.s32.totalorder %s285, 31
        %s287 = scalar_select %p286, %s285, 31
        %s288 = smul.addr %s287, 8
        %s289 = scalar_lea.vmem %s0, %s288
        %s290 = smul.u32 16, %s19
        %s291 = smul.u32 16, %s19
        %p292 = scmp.lt.s32.totalorder %s291, 31
        %s293 = scalar_select %p292, %s291, 31
        %s294 = smul.addr %s293, 4
        %s295 = scalar_lea.vmem %s7, %s294
        %s296 = smul.u32 16, %s19
        %v298 = vld [vmem:[%s289] sm:$0xff]
        %v299 = vld [vmem:[%s289 + $0x8] sm:$0xff]
        %v300 = vld [vmem:[%s289 + $0x10] sm:$0xff]
        %v301 = vld [vmem:[%s289 + $0x18] sm:$0xff]
        %v302 = vld [vmem:[%s289 + $0x20] sm:$0xff]
        %v303 = vld [vmem:[%s289 + $0x28] sm:$0xff]
        %v304 = vld [vmem:[%s289 + $0x30] sm:$0xff]
        %v305 = vld [vmem:[%s289 + $0x38] sm:$0xff]
        %v306 = vld [vmem:[%s289 + $0x40] sm:$0xff]
        %v307 = vld [vmem:[%s289 + $0x48] sm:$0xff]
        %v308 = vld [vmem:[%s289 + $0x50] sm:$0xff]
        %v309 = vld [vmem:[%s289 + $0x58] sm:$0xff]
        %v310 = vld [vmem:[%s289 + $0x60] sm:$0xff]
        %v311 = vld [vmem:[%s289 + $0x68] sm:$0xff]
        %v312 = vld [vmem:[%s289 + $0x70] sm:$0xff]
        %v313 = vld [vmem:[%s289 + $0x78] sm:$0xff]
        %v314 = vpack.c.bf16 %v299, %v298
        %v315 = vpack.c.bf16 %v301, %v300
        %v316 = vpack.c.bf16 %v303, %v302
        %v317 = vpack.c.bf16 %v305, %v304
        %v318 = vpack.c.bf16 %v307, %v306
        %v319 = vpack.c.bf16 %v309, %v308
        %v320 = vpack.c.bf16 %v311, %v310
        %v321 = vpack.c.bf16 %v313, %v312
        %v322 = vld [vmem:[#allocation2] sm:$0xff]
        %v323 = vld [vmem:[#allocation2 + $0x8] sm:$0xff]
        %v324 = vld [vmem:[#allocation2 + $0x10] sm:$0xff]
        %v325 = vld [vmem:[#allocation2 + $0x18] sm:$0xff]
        %v326 = vld [vmem:[#allocation2 + $0x20] sm:$0xff]
        %v327 = vld [vmem:[#allocation2 + $0x28] sm:$0xff]
        %v328 = vld [vmem:[#allocation2 + $0x30] sm:$0xff]
        %v329 = vld [vmem:[#allocation2 + $0x38] sm:$0x33]
        %v330 = vld [vmem:[%s2] sm:$0x3]
        %v332 = vlaneseq
        %v333 = vshrl.u32 %v332, 7
        %v334 = vsub.s32 0, %v333
        %v335 = vrot.slane %v330, %v334
        %v336 = vlaneseq
        %v337 = vshrl.u32 %v336, 7
        %v338 = vsub.s32 1, %v337
        %v339 = vrot.slane %v330, %v338
        %v350 = vunpack.c.l.b16 %v322
        %v351 = vunpack.c.h.b16 %v322
        %v352 = vunpack.c.l.b16 %v323
        %v353 = vunpack.c.h.b16 %v323
        %v354 = vunpack.c.l.b16 %v324
        %v355 = vunpack.c.h.b16 %v324
        %v356 = vunpack.c.l.b16 %v325
        %v357 = vunpack.c.h.b16 %v325
        %v358 = vunpack.c.l.b16 %v326
        %v359 = vunpack.c.h.b16 %v326
        %v360 = vunpack.c.l.b16 %v327
        %v361 = vunpack.c.h.b16 %v327
        %v362 = vunpack.c.l.b16 %v328
        %v363 = vunpack.c.h.b16 %v328
        %v364 = vunpack.c.l.b16 %v329
        %v365 = vunpack.c.h.b16 %v329
        %v366 = vpack.c.b16 %v352, %v350
        %v367 = vpack.c.b16 %v353, %v351
        %v368 = vpack.c.b16 %v356, %v354
        %v369 = vpack.c.b16 %v357, %v355
        %v370 = vpack.c.b16 %v360, %v358
        %v371 = vpack.c.b16 %v361, %v359
        %v372 = vpack.c.b16 %v364, %v362
        %v373 = vpack.c.b16 %v365, %v363
        %vm380 = vcmask 490496
        %v382 = vsel %vm380, %v314, 0
        %v385 = vsel %vm380, %v315, 0
        %v388 = vsel %vm380, %v316, 0
        %v391 = vsel %vm380, %v317, 0
        %v394 = vsel %vm380, %v318, 0
        %v397 = vsel %vm380, %v319, 0
        %v400 = vsel %vm380, %v320, 0
        %v403 = vsel %vm380, %v321, 0
        %vm405 = vcmask 1045504
        %v407 = vsel %vm405, %v372, 0
        %v410 = vsel %vm405, %v373, 0
        %412 = vmatprep.subr.bf16.mxu0 0
        %413 = vmatpush1.bf16.msra.mxu0 0
        %414 = vmatprep.subr.bf16.mxu0 0
        %415 = vmatpush1.bf16.msra.mxu0 0
        %416 = vmatprep.subr.bf16.mxu0 0
        %417 = vmatpush1.bf16.msra.mxu0 0
        %418 = vmatprep.subr.bf16.mxu0 0
        %419 = vmatpush1.bf16.msra.mxu0 0
        %420 = vmatprep.subr.bf16.mxu0 %v410
        %421 = vmatpush1.bf16.msra.mxu0 %v407
        %422 = vmatprep.subr.bf16.mxu0 %v371
        %423 = vmatpush1.bf16.msra.mxu0 %v370
        %424 = vmatprep.subr.bf16.mxu0 %v369
        %425 = vmatpush1.bf16.msra.mxu0 %v368
        %426 = vmatprep.subr.bf16.mxu0 %v367
        %427 = vmatpush1.bf16.msra.mxu0 %v366
        %428 = vmatprep.subr.bf16.mxu0 0
        %429 = vmatpush2.bf16.msra.mxu0 0
        %430 = vmatprep.subr.bf16.mxu0 0
        %431 = vmatpush2.bf16.msra.mxu0 0
        %432 = vmatprep.subr.bf16.mxu0 0
        %433 = vmatpush2.bf16.msra.mxu0 0
        %434 = vmatprep.subr.bf16.mxu0 0
        %435 = vmatpush2.bf16.msra.mxu0 0
        %436 = vmatprep.subr.bf16.mxu0 0
        %437 = vmatpush2.bf16.msra.mxu0 0
        %438 = vmatprep.subr.bf16.mxu0 0
        %439 = vmatpush2.bf16.msra.mxu0 0
        %440 = vmatprep.subr.bf16.mxu0 0
        %441 = vmatpush2.bf16.msra.mxu0 0
        %442 = vmatprep.subr.bf16.mxu0 0
        %443 = vmatpush2.bf16.msra.mxu0 0
        %444 = vmatprep.mubr.bf16.mxu0 0
        %445 = vmatmul.mubr.bf16.gmra.mxu0 %v382
        %v446 = vpop.f32.mrf.mxu0
        %v447 = vadd.f32 %v335, %v446
        %v448 = vpop.f32.mrf.mxu0
        %v449 = vadd.f32 %v339, %v448
        %v450 = vpop.f32.mrf.mxu0
        %v451 = vadd.f32 %v335, %v450
        %v452 = vpop.f32.mrf.mxu0
        %v453 = vadd.f32 %v339, %v452
        %454 = vmatprep.mubr.bf16.mxu0 0
        %455 = vmatmul.mubr.bf16.gmra.mxu0 %v385
        %v456 = vpop.f32.mrf.mxu0
        %v457 = vadd.f32 %v335, %v456
        %v458 = vpop.f32.mrf.mxu0
        %v459 = vadd.f32 %v339, %v458
        %v460 = vpop.f32.mrf.mxu0
        %v461 = vadd.f32 %v335, %v460
        %v462 = vpop.f32.mrf.mxu0
        %v463 = vadd.f32 %v339, %v462
        %464 = vmatprep.mubr.bf16.mxu0 0
        %465 = vmatmul.mubr.bf16.gmra.mxu0 %v388
        %v466 = vpop.f32.mrf.mxu0
        %v467 = vadd.f32 %v335, %v466
        %v468 = vpop.f32.mrf.mxu0
        %v469 = vadd.f32 %v339, %v468
        %v470 = vpop.f32.mrf.mxu0
        %v471 = vadd.f32 %v335, %v470
        %v472 = vpop.f32.mrf.mxu0
        %v473 = vadd.f32 %v339, %v472
        %474 = vmatprep.mubr.bf16.mxu0 0
        %475 = vmatmul.mubr.bf16.gmra.mxu0 %v391
        %v476 = vpop.f32.mrf.mxu0
        %v477 = vadd.f32 %v335, %v476
        %v478 = vpop.f32.mrf.mxu0
        %v479 = vadd.f32 %v339, %v478
        %v480 = vpop.f32.mrf.mxu0
        %v481 = vadd.f32 %v335, %v480
        %v482 = vpop.f32.mrf.mxu0
        %v483 = vadd.f32 %v339, %v482
        %484 = vmatprep.mubr.bf16.mxu0 0
        %485 = vmatmul.mubr.bf16.gmra.mxu0 %v394
        %v486 = vpop.f32.mrf.mxu0
        %v487 = vadd.f32 %v335, %v486
        %v488 = vpop.f32.mrf.mxu0
        %v489 = vadd.f32 %v339, %v488
        %v490 = vpop.f32.mrf.mxu0
        %v491 = vadd.f32 %v335, %v490
        %v492 = vpop.f32.mrf.mxu0
        %v493 = vadd.f32 %v339, %v492
        %494 = vmatprep.mubr.bf16.mxu0 0
        %495 = vmatmul.mubr.bf16.gmra.mxu0 %v397
        %v496 = vpop.f32.mrf.mxu0
        %v497 = vadd.f32 %v335, %v496
        %v498 = vpop.f32.mrf.mxu0
        %v499 = vadd.f32 %v339, %v498
        %v500 = vpop.f32.mrf.mxu0
        %v501 = vadd.f32 %v335, %v500
        %v502 = vpop.f32.mrf.mxu0
        %v503 = vadd.f32 %v339, %v502
        %504 = vmatprep.mubr.bf16.mxu0 0
        %505 = vmatmul.mubr.bf16.gmra.mxu0 %v400
        %v506 = vpop.f32.mrf.mxu0
        %v507 = vadd.f32 %v335, %v506
        %v508 = vpop.f32.mrf.mxu0
        %v509 = vadd.f32 %v339, %v508
        %v510 = vpop.f32.mrf.mxu0
        %v511 = vadd.f32 %v335, %v510
        %v512 = vpop.f32.mrf.mxu0
        %v513 = vadd.f32 %v339, %v512
        %514 = vmatprep.mubr.bf16.mxu0 0
        %515 = vmatmul.mubr.bf16.gmra.mxu0 %v403
        %v516 = vpop.f32.mrf.mxu0
        %v517 = vadd.f32 %v335, %v516
        %v518 = vpop.f32.mrf.mxu0
        %v519 = vadd.f32 %v339, %v518
        %v520 = vpop.f32.mrf.mxu0
        %v521 = vadd.f32 %v335, %v520
        %v522 = vpop.f32.mrf.mxu0
        %v523 = vadd.f32 %v339, %v522
        %524 = vdwg.mxu0
        %v525 = vmax.f32 %v447, 0.0
        %v526 = vmax.f32 %v449, 0.0
        %v527 = vmax.f32 %v451, 0.0
        %v528 = vmax.f32 %v453, 0.0
        %v529 = vmax.f32 %v457, 0.0
        %v530 = vmax.f32 %v459, 0.0
        %v531 = vmax.f32 %v461, 0.0
        %v532 = vmax.f32 %v463, 0.0
        %v533 = vmax.f32 %v467, 0.0
        %v534 = vmax.f32 %v469, 0.0
        %v535 = vmax.f32 %v471, 0.0
        %v536 = vmax.f32 %v473, 0.0
        %v537 = vmax.f32 %v477, 0.0
        %v538 = vmax.f32 %v479, 0.0
        %v539 = vmax.f32 %v481, 0.0
        %v540 = vmax.f32 %v483, 0.0
        %v541 = vmax.f32 %v487, 0.0
        %v542 = vmax.f32 %v489, 0.0
        %v543 = vmax.f32 %v491, 0.0
        %v544 = vmax.f32 %v493, 0.0
        %v545 = vmax.f32 %v497, 0.0
        %v546 = vmax.f32 %v499, 0.0
        %v547 = vmax.f32 %v501, 0.0
        %v548 = vmax.f32 %v503, 0.0
        %v549 = vmax.f32 %v507, 0.0
        %v550 = vmax.f32 %v509, 0.0
        %v551 = vmax.f32 %v511, 0.0
        %v552 = vmax.f32 %v513, 0.0
        %v553 = vmax.f32 %v517, 0.0
        %v554 = vmax.f32 %v519, 0.0
        %v555 = vmax.f32 %v521, 0.0
        %v556 = vmax.f32 %v523, 0.0
        %v557 = vpack.c.bf16 %v527, %v525
        %v558 = vpack.c.bf16 %v528, %v526
        %v559 = vpack.c.bf16 %v531, %v529
        %v560 = vpack.c.bf16 %v532, %v530
        %v561 = vpack.c.bf16 %v535, %v533
        %v562 = vpack.c.bf16 %v536, %v534
        %v563 = vpack.c.bf16 %v539, %v537
        %v564 = vpack.c.bf16 %v540, %v538
        %v565 = vpack.c.bf16 %v543, %v541
        %v566 = vpack.c.bf16 %v544, %v542
        %v567 = vpack.c.bf16 %v547, %v545
        %v568 = vpack.c.bf16 %v548, %v546
        %v569 = vpack.c.bf16 %v551, %v549
        %v570 = vpack.c.bf16 %v552, %v550
        %v571 = vpack.c.bf16 %v555, %v553
        %v572 = vpack.c.bf16 %v556, %v554
        %v573 = vld [vmem:[%s3] sm:$0xff]
        %v574 = vld [vmem:[%s3 + $0x8] sm:$0xff]
        %v575 = vld [vmem:[%s3 + $0x10] sm:$0xff]
        %v576 = vld [vmem:[%s3 + $0x18] sm:$0xff]
        %v577 = vld [vmem:[%s3 + $0x20] sm:$0xff]
        %v578 = vld [vmem:[%s3 + $0x28] sm:$0xff]
        %v579 = vld [vmem:[%s3 + $0x30] sm:$0xff]
        %v580 = vld [vmem:[%s3 + $0x38] sm:$0xff]
        %v581 = vld [vmem:[%s3 + $0x40] sm:$0xff]
        %v582 = vld [vmem:[%s3 + $0x48] sm:$0xff]
        %v583 = vld [vmem:[%s3 + $0x50] sm:$0xff]
        %v584 = vld [vmem:[%s3 + $0x58] sm:$0xff]
        %v585 = vld [vmem:[%s3 + $0x60] sm:$0xff]
        %v586 = vld [vmem:[%s3 + $0x68] sm:$0xff]
        %v587 = vld [vmem:[%s3 + $0x70] sm:$0xff]
        %v588 = vld [vmem:[%s3 + $0x78] sm:$0xff]
        %v589 = vld [vmem:[%s3 + $0x80] sm:$0xff]
        %v590 = vld [vmem:[%s3 + $0x88] sm:$0xff]
        %v591 = vld [vmem:[%s3 + $0x90] sm:$0xff]
        %v592 = vld [vmem:[%s3 + $0x98] sm:$0xff]
        %v593 = vld [vmem:[%s3 + $0xa0] sm:$0xff]
        %v594 = vld [vmem:[%s3 + $0xa8] sm:$0xff]
        %v595 = vld [vmem:[%s3 + $0xb0] sm:$0xff]
        %v596 = vld [vmem:[%s3 + $0xb8] sm:$0xff]
        %v597 = vld [vmem:[%s3 + $0xc0] sm:$0xff]
        %v598 = vld [vmem:[%s3 + $0xc8] sm:$0xff]
        %v599 = vld [vmem:[%s3 + $0xd0] sm:$0xff]
        %v600 = vld [vmem:[%s3 + $0xd8] sm:$0xff]
        %v601 = vld [vmem:[%s3 + $0xe0] sm:$0xff]
        %v602 = vld [vmem:[%s3 + $0xe8] sm:$0xff]
        %v603 = vld [vmem:[%s3 + $0xf0] sm:$0xff]
        %v604 = vld [vmem:[%s3 + $0xf8] sm:$0xff]
        %v605 = vld [vmem:[%s4] sm:$0x3]
        %v607 = vlaneseq
        %v608 = vshrl.u32 %v607, 7
        %v609 = vsub.s32 0, %v608
        %v610 = vrot.slane %v605, %v609
        %v611 = vlaneseq
        %v612 = vshrl.u32 %v611, 7
        %v613 = vsub.s32 1, %v612
        %v614 = vrot.slane %v605, %v613
        %v649 = vunpack.c.l.b16 %v573
        %v650 = vunpack.c.h.b16 %v573
        %v651 = vunpack.c.l.b16 %v574
        %v652 = vunpack.c.h.b16 %v574
        %v653 = vunpack.c.l.b16 %v575
        %v654 = vunpack.c.h.b16 %v575
        %v655 = vunpack.c.l.b16 %v576
        %v656 = vunpack.c.h.b16 %v576
        %v657 = vunpack.c.l.b16 %v577
        %v658 = vunpack.c.h.b16 %v577
        %v659 = vunpack.c.l.b16 %v578
        %v660 = vunpack.c.h.b16 %v578
        %v661 = vunpack.c.l.b16 %v579
        %v662 = vunpack.c.h.b16 %v579
        %v663 = vunpack.c.l.b16 %v580
        %v664 = vunpack.c.h.b16 %v580
        %v665 = vunpack.c.l.b16 %v581
        %v666 = vunpack.c.h.b16 %v581
        %v667 = vunpack.c.l.b16 %v582
        %v668 = vunpack.c.h.b16 %v582
        %v669 = vunpack.c.l.b16 %v583
        %v670 = vunpack.c.h.b16 %v583
        %v671 = vunpack.c.l.b16 %v584
        %v672 = vunpack.c.h.b16 %v584
        %v673 = vunpack.c.l.b16 %v585
        %v674 = vunpack.c.h.b16 %v585
        %v675 = vunpack.c.l.b16 %v586
        %v676 = vunpack.c.h.b16 %v586
        %v677 = vunpack.c.l.b16 %v587
        %v678 = vunpack.c.h.b16 %v587
        %v679 = vunpack.c.l.b16 %v588
        %v680 = vunpack.c.h.b16 %v588
        %v681 = vunpack.c.l.b16 %v589
        %v682 = vunpack.c.h.b16 %v589
        %v683 = vunpack.c.l.b16 %v590
        %v684 = vunpack.c.h.b16 %v590
        %v685 = vunpack.c.l.b16 %v591
        %v686 = vunpack.c.h.b16 %v591
        %v687 = vunpack.c.l.b16 %v592
        %v688 = vunpack.c.h.b16 %v592
        %v689 = vunpack.c.l.b16 %v593
        %v690 = vunpack.c.h.b16 %v593
        %v691 = vunpack.c.l.b16 %v594
        %v692 = vunpack.c.h.b16 %v594
        %v693 = vunpack.c.l.b16 %v595
        %v694 = vunpack.c.h.b16 %v595
        %v695 = vunpack.c.l.b16 %v596
        %v696 = vunpack.c.h.b16 %v596
        %v697 = vunpack.c.l.b16 %v597
        %v698 = vunpack.c.h.b16 %v597
        %v699 = vunpack.c.l.b16 %v598
        %v700 = vunpack.c.h.b16 %v598
        %v701 = vunpack.c.l.b16 %v599
        %v702 = vunpack.c.h.b16 %v599
        %v703 = vunpack.c.l.b16 %v600
        %v704 = vunpack.c.h.b16 %v600
        %v705 = vunpack.c.l.b16 %v601
        %v706 = vunpack.c.h.b16 %v601
        %v707 = vunpack.c.l.b16 %v602
        %v708 = vunpack.c.h.b16 %v602
        %v709 = vunpack.c.l.b16 %v603
        %v710 = vunpack.c.h.b16 %v603
        %v711 = vunpack.c.l.b16 %v604
        %v712 = vunpack.c.h.b16 %v604
        %v713 = vpack.c.b16 %v651, %v649
        %v714 = vpack.c.b16 %v652, %v650
        %v715 = vpack.c.b16 %v655, %v653
        %v716 = vpack.c.b16 %v656, %v654
        %v717 = vpack.c.b16 %v659, %v657
        %v718 = vpack.c.b16 %v660, %v658
        %v719 = vpack.c.b16 %v663, %v661
        %v720 = vpack.c.b16 %v664, %v662
        %v721 = vpack.c.b16 %v667, %v665
        %v722 = vpack.c.b16 %v668, %v666
        %v723 = vpack.c.b16 %v671, %v669
        %v724 = vpack.c.b16 %v672, %v670
        %v725 = vpack.c.b16 %v675, %v673
        %v726 = vpack.c.b16 %v676, %v674
        %v727 = vpack.c.b16 %v679, %v677
        %v728 = vpack.c.b16 %v680, %v678
        %v729 = vpack.c.b16 %v683, %v681
        %v730 = vpack.c.b16 %v684, %v682
        %v731 = vpack.c.b16 %v687, %v685
        %v732 = vpack.c.b16 %v688, %v686
        %v733 = vpack.c.b16 %v691, %v689
        %v734 = vpack.c.b16 %v692, %v690
        %v735 = vpack.c.b16 %v695, %v693
        %v736 = vpack.c.b16 %v696, %v694
        %v737 = vpack.c.b16 %v699, %v697
        %v738 = vpack.c.b16 %v700, %v698
        %v739 = vpack.c.b16 %v703, %v701
        %v740 = vpack.c.b16 %v704, %v702
        %v741 = vpack.c.b16 %v707, %v705
        %v742 = vpack.c.b16 %v708, %v706
        %v743 = vpack.c.b16 %v711, %v709
        %v744 = vpack.c.b16 %v712, %v710
        %777 = vmatprep.subr.bf16.mxu0 %v728
        %778 = vmatpush1.bf16.msra.mxu0 %v727
        %779 = vmatprep.subr.bf16.mxu0 %v726
        %780 = vmatpush1.bf16.msra.mxu0 %v725
        %781 = vmatprep.subr.bf16.mxu0 %v724
        %782 = vmatpush1.bf16.msra.mxu0 %v723
        %783 = vmatprep.subr.bf16.mxu0 %v722
        %784 = vmatpush1.bf16.msra.mxu0 %v721
        %785 = vmatprep.subr.bf16.mxu0 %v720
        %786 = vmatpush1.bf16.msra.mxu0 %v719
        %787 = vmatprep.subr.bf16.mxu0 %v718
        %788 = vmatpush1.bf16.msra.mxu0 %v717
        %789 = vmatprep.subr.bf16.mxu0 %v716
        %790 = vmatpush1.bf16.msra.mxu0 %v715
        %791 = vmatprep.subr.bf16.mxu0 %v714
        %792 = vmatpush1.bf16.msra.mxu0 %v713
        %793 = vmatprep.subr.bf16.mxu0 %v744
        %794 = vmatpush2.bf16.msra.mxu0 %v743
        %795 = vmatprep.subr.bf16.mxu0 %v742
        %796 = vmatpush2.bf16.msra.mxu0 %v741
        %797 = vmatprep.subr.bf16.mxu0 %v740
        %798 = vmatpush2.bf16.msra.mxu0 %v739
        %799 = vmatprep.subr.bf16.mxu0 %v738
        %800 = vmatpush2.bf16.msra.mxu0 %v737
        %801 = vmatprep.subr.bf16.mxu0 %v736
        %802 = vmatpush2.bf16.msra.mxu0 %v735
        %803 = vmatprep.subr.bf16.mxu0 %v734
        %804 = vmatpush2.bf16.msra.mxu0 %v733
        %805 = vmatprep.subr.bf16.mxu0 %v732
        %806 = vmatpush2.bf16.msra.mxu0 %v731
        %807 = vmatprep.subr.bf16.mxu0 %v730
        %808 = vmatpush2.bf16.msra.mxu0 %v729
        %809 = vmatprep.mubr.bf16.mxu0 %v558
        %810 = vmatmul.mubr.bf16.gmra.mxu0 %v557
        %v811 = vpop.f32.mrf.mxu0
        %v812 = vadd.f32 %v610, %v811
        %v813 = vpop.f32.mrf.mxu0
        %v814 = vadd.f32 %v614, %v813
        %v815 = vpop.f32.mrf.mxu0
        %v816 = vadd.f32 %v610, %v815
        %v817 = vpop.f32.mrf.mxu0
        %v818 = vadd.f32 %v614, %v817
        %819 = vmatprep.mubr.bf16.mxu0 %v560
        %820 = vmatmul.mubr.bf16.gmra.mxu0 %v559
        %v821 = vpop.f32.mrf.mxu0
        %v822 = vadd.f32 %v610, %v821
        %v823 = vpop.f32.mrf.mxu0
        %v824 = vadd.f32 %v614, %v823
        %v825 = vpop.f32.mrf.mxu0
        %v826 = vadd.f32 %v610, %v825
        %v827 = vpop.f32.mrf.mxu0
        %v828 = vadd.f32 %v614, %v827
        %829 = vmatprep.mubr.bf16.mxu0 %v562
        %830 = vmatmul.mubr.bf16.gmra.mxu0 %v561
        %v831 = vpop.f32.mrf.mxu0
        %v832 = vadd.f32 %v610, %v831
        %v833 = vpop.f32.mrf.mxu0
        %v834 = vadd.f32 %v614, %v833
        %v835 = vpop.f32.mrf.mxu0
        %v836 = vadd.f32 %v610, %v835
        %v837 = vpop.f32.mrf.mxu0
        %v838 = vadd.f32 %v614, %v837
        %839 = vmatprep.mubr.bf16.mxu0 %v564
        %840 = vmatmul.mubr.bf16.gmra.mxu0 %v563
        %v841 = vpop.f32.mrf.mxu0
        %v842 = vadd.f32 %v610, %v841
        %v843 = vpop.f32.mrf.mxu0
        %v844 = vadd.f32 %v614, %v843
        %v845 = vpop.f32.mrf.mxu0
        %v846 = vadd.f32 %v610, %v845
        %v847 = vpop.f32.mrf.mxu0
        %v848 = vadd.f32 %v614, %v847
        %849 = vmatprep.mubr.bf16.mxu0 %v566
        %850 = vmatmul.mubr.bf16.gmra.mxu0 %v565
        %v851 = vpop.f32.mrf.mxu0
        %v852 = vadd.f32 %v610, %v851
        %v853 = vpop.f32.mrf.mxu0
        %v854 = vadd.f32 %v614, %v853
        %v855 = vpop.f32.mrf.mxu0
        %v856 = vadd.f32 %v610, %v855
        %v857 = vpop.f32.mrf.mxu0
        %v858 = vadd.f32 %v614, %v857
        %859 = vmatprep.mubr.bf16.mxu0 %v568
        %860 = vmatmul.mubr.bf16.gmra.mxu0 %v567
        %v861 = vpop.f32.mrf.mxu0
        %v862 = vadd.f32 %v610, %v861
        %v863 = vpop.f32.mrf.mxu0
        %v864 = vadd.f32 %v614, %v863
        %v865 = vpop.f32.mrf.mxu0
        %v866 = vadd.f32 %v610, %v865
        %v867 = vpop.f32.mrf.mxu0
        %v868 = vadd.f32 %v614, %v867
        %869 = vmatprep.mubr.bf16.mxu0 %v570
        %870 = vmatmul.mubr.bf16.gmra.mxu0 %v569
        %v871 = vpop.f32.mrf.mxu0
        %v872 = vadd.f32 %v610, %v871
        %v873 = vpop.f32.mrf.mxu0
        %v874 = vadd.f32 %v614, %v873
        %v875 = vpop.f32.mrf.mxu0
        %v876 = vadd.f32 %v610, %v875
        %v877 = vpop.f32.mrf.mxu0
        %v878 = vadd.f32 %v614, %v877
        %879 = vmatprep.mubr.bf16.mxu0 %v572
        %880 = vmatmul.mubr.bf16.gmra.mxu0 %v571
        %v881 = vpop.f32.mrf.mxu0
        %v882 = vadd.f32 %v610, %v881
        %v883 = vpop.f32.mrf.mxu0
        %v884 = vadd.f32 %v614, %v883
        %v885 = vpop.f32.mrf.mxu0
        %v886 = vadd.f32 %v610, %v885
        %v887 = vpop.f32.mrf.mxu0
        %v888 = vadd.f32 %v614, %v887
        %889 = vdwg.mxu0
        %v890 = vmax.f32 %v812, 0.0
        %v891 = vmax.f32 %v814, 0.0
        %v892 = vmax.f32 %v816, 0.0
        %v893 = vmax.f32 %v818, 0.0
        %v894 = vmax.f32 %v822, 0.0
        %v895 = vmax.f32 %v824, 0.0
        %v896 = vmax.f32 %v826, 0.0
        %v897 = vmax.f32 %v828, 0.0
        %v898 = vmax.f32 %v832, 0.0
        %v899 = vmax.f32 %v834, 0.0
        %v900 = vmax.f32 %v836, 0.0
        %v901 = vmax.f32 %v838, 0.0
        %v902 = vmax.f32 %v842, 0.0
        %v903 = vmax.f32 %v844, 0.0
        %v904 = vmax.f32 %v846, 0.0
        %v905 = vmax.f32 %v848, 0.0
        %v906 = vmax.f32 %v852, 0.0
        %v907 = vmax.f32 %v854, 0.0
        %v908 = vmax.f32 %v856, 0.0
        %v909 = vmax.f32 %v858, 0.0
        %v910 = vmax.f32 %v862, 0.0
        %v911 = vmax.f32 %v864, 0.0
        %v912 = vmax.f32 %v866, 0.0
        %v913 = vmax.f32 %v868, 0.0
        %v914 = vmax.f32 %v872, 0.0
        %v915 = vmax.f32 %v874, 0.0
        %v916 = vmax.f32 %v876, 0.0
        %v917 = vmax.f32 %v878, 0.0
        %v918 = vmax.f32 %v882, 0.0
        %v919 = vmax.f32 %v884, 0.0
        %v920 = vmax.f32 %v886, 0.0
        %v921 = vmax.f32 %v888, 0.0
        %v922 = vpack.c.bf16 %v892, %v890
        %v923 = vpack.c.bf16 %v893, %v891
        %v924 = vpack.c.bf16 %v896, %v894
        %v925 = vpack.c.bf16 %v897, %v895
        %v926 = vpack.c.bf16 %v900, %v898
        %v927 = vpack.c.bf16 %v901, %v899
        %v928 = vpack.c.bf16 %v904, %v902
        %v929 = vpack.c.bf16 %v905, %v903
        %v930 = vpack.c.bf16 %v908, %v906
        %v931 = vpack.c.bf16 %v909, %v907
        %v932 = vpack.c.bf16 %v912, %v910
        %v933 = vpack.c.bf16 %v913, %v911
        %v934 = vpack.c.bf16 %v916, %v914
        %v935 = vpack.c.bf16 %v917, %v915
        %v936 = vpack.c.bf16 %v920, %v918
        %v937 = vpack.c.bf16 %v921, %v919
        %v938 = vld [vmem:[%s5] sm:$0xf]
        %v939 = vld [vmem:[%s5 + $0x4] sm:$0xf]
        %v940 = vld [vmem:[%s5 + $0x8] sm:$0xf]
        %v941 = vld [vmem:[%s5 + $0xc] sm:$0xf]
        %v942 = vld [vmem:[%s5 + $0x10] sm:$0xf]
        %v943 = vld [vmem:[%s5 + $0x14] sm:$0xf]
        %v944 = vld [vmem:[%s5 + $0x18] sm:$0xf]
        %v945 = vld [vmem:[%s5 + $0x1c] sm:$0xf]
        %v946 = vld [vmem:[%s5 + $0x20] sm:$0xf]
        %v947 = vld [vmem:[%s5 + $0x24] sm:$0xf]
        %v948 = vld [vmem:[%s5 + $0x28] sm:$0xf]
        %v949 = vld [vmem:[%s5 + $0x2c] sm:$0xf]
        %v950 = vld [vmem:[%s5 + $0x30] sm:$0xf]
        %v951 = vld [vmem:[%s5 + $0x34] sm:$0xf]
        %v952 = vld [vmem:[%s5 + $0x38] sm:$0xf]
        %v953 = vld [vmem:[%s5 + $0x3c] sm:$0xf]
        %v954 = vld [vmem:[%s5 + $0x40] sm:$0xf]
        %v955 = vld [vmem:[%s5 + $0x44] sm:$0xf]
        %v956 = vld [vmem:[%s5 + $0x48] sm:$0xf]
        %v957 = vld [vmem:[%s5 + $0x4c] sm:$0xf]
        %v958 = vld [vmem:[%s5 + $0x50] sm:$0xf]
        %v959 = vld [vmem:[%s5 + $0x54] sm:$0xf]
        %v960 = vld [vmem:[%s5 + $0x58] sm:$0xf]
        %v961 = vld [vmem:[%s5 + $0x5c] sm:$0xf]
        %v962 = vld [vmem:[%s5 + $0x60] sm:$0xf]
        %v963 = vld [vmem:[%s5 + $0x64] sm:$0xf]
        %v964 = vld [vmem:[%s5 + $0x68] sm:$0xf]
        %v965 = vld [vmem:[%s5 + $0x6c] sm:$0xf]
        %v966 = vld [vmem:[%s5 + $0x70] sm:$0xf]
        %v967 = vld [vmem:[%s5 + $0x74] sm:$0xf]
        %v968 = vld [vmem:[%s5 + $0x78] sm:$0xf]
        %v969 = vld [vmem:[%s5 + $0x7c] sm:$0xf]
        %v970 = vld [vmem:[%s6] sm:$0x1]
        %v972 = vlaneseq
        %v973 = vshrl.u32 %v972, 7
        %v974 = vsub.s32 0, %v973
        %v975 = vrot.slane %v970, %v974
        %v1009 = vunpack.c.l.b16 %v938
        %v1010 = vunpack.c.l.b16 %v939
        %v1011 = vunpack.c.l.b16 %v940
        %v1012 = vunpack.c.l.b16 %v941
        %v1013 = vunpack.c.l.b16 %v942
        %v1014 = vunpack.c.l.b16 %v943
        %v1015 = vunpack.c.l.b16 %v944
        %v1016 = vunpack.c.l.b16 %v945
        %v1017 = vunpack.c.l.b16 %v946
        %v1018 = vunpack.c.l.b16 %v947
        %v1019 = vunpack.c.l.b16 %v948
        %v1020 = vunpack.c.l.b16 %v949
        %v1021 = vunpack.c.l.b16 %v950
        %v1022 = vunpack.c.l.b16 %v951
        %v1023 = vunpack.c.l.b16 %v952
        %v1024 = vunpack.c.l.b16 %v953
        %v1025 = vunpack.c.l.b16 %v954
        %v1026 = vunpack.c.l.b16 %v955
        %v1027 = vunpack.c.l.b16 %v956
        %v1028 = vunpack.c.l.b16 %v957
        %v1029 = vunpack.c.l.b16 %v958
        %v1030 = vunpack.c.l.b16 %v959
        %v1031 = vunpack.c.l.b16 %v960
        %v1032 = vunpack.c.l.b16 %v961
        %v1033 = vunpack.c.l.b16 %v962
        %v1034 = vunpack.c.l.b16 %v963
        %v1035 = vunpack.c.l.b16 %v964
        %v1036 = vunpack.c.l.b16 %v965
        %v1037 = vunpack.c.l.b16 %v966
        %v1038 = vunpack.c.l.b16 %v967
        %v1039 = vunpack.c.l.b16 %v968
        %v1040 = vunpack.c.l.b16 %v969
        %v1041 = vpack.c.b16 %v1010, %v1009
        %v1042 = vpack.c.b16 %v1012, %v1011
        %v1043 = vpack.c.b16 %v1014, %v1013
        %v1044 = vpack.c.b16 %v1016, %v1015
        %v1045 = vpack.c.b16 %v1018, %v1017
        %v1046 = vpack.c.b16 %v1020, %v1019
        %v1047 = vpack.c.b16 %v1022, %v1021
        %v1048 = vpack.c.b16 %v1024, %v1023
        %v1049 = vpack.c.b16 %v1026, %v1025
        %v1050 = vpack.c.b16 %v1028, %v1027
        %v1051 = vpack.c.b16 %v1030, %v1029
        %v1052 = vpack.c.b16 %v1032, %v1031
        %v1053 = vpack.c.b16 %v1034, %v1033
        %v1054 = vpack.c.b16 %v1036, %v1035
        %v1055 = vpack.c.b16 %v1038, %v1037
        %v1056 = vpack.c.b16 %v1040, %v1039
        %1073 = vmatprep.subr.bf16.mxu0 0
        %1074 = vmatpush1.bf16.msra.mxu0 %v1048
        %1075 = vmatprep.subr.bf16.mxu0 0
        %1076 = vmatpush1.bf16.msra.mxu0 %v1047
        %1077 = vmatprep.subr.bf16.mxu0 0
        %1078 = vmatpush1.bf16.msra.mxu0 %v1046
        %1079 = vmatprep.subr.bf16.mxu0 0
        %1080 = vmatpush1.bf16.msra.mxu0 %v1045
        %1081 = vmatprep.subr.bf16.mxu0 0
        %1082 = vmatpush1.bf16.msra.mxu0 %v1044
        %1083 = vmatprep.subr.bf16.mxu0 0
        %1084 = vmatpush1.bf16.msra.mxu0 %v1043
        %1085 = vmatprep.subr.bf16.mxu0 0
        %1086 = vmatpush1.bf16.msra.mxu0 %v1042
        %1087 = vmatprep.subr.bf16.mxu0 0
        %1088 = vmatpush1.bf16.msra.mxu0 %v1041
        %1089 = vmatprep.subr.bf16.mxu0 0
        %1090 = vmatpush2.bf16.msra.mxu0 %v1056
        %1091 = vmatprep.subr.bf16.mxu0 0
        %1092 = vmatpush2.bf16.msra.mxu0 %v1055
        %1093 = vmatprep.subr.bf16.mxu0 0
        %1094 = vmatpush2.bf16.msra.mxu0 %v1054
        %1095 = vmatprep.subr.bf16.mxu0 0
        %1096 = vmatpush2.bf16.msra.mxu0 %v1053
        %1097 = vmatprep.subr.bf16.mxu0 0
        %1098 = vmatpush2.bf16.msra.mxu0 %v1052
        %1099 = vmatprep.subr.bf16.mxu0 0
        %1100 = vmatpush2.bf16.msra.mxu0 %v1051
        %1101 = vmatprep.subr.bf16.mxu0 0
        %1102 = vmatpush2.bf16.msra.mxu0 %v1050
        %1103 = vmatprep.subr.bf16.mxu0 0
        %1104 = vmatpush2.bf16.msra.mxu0 %v1049
        %1105 = vmatprep.mubr.bf16.mxu0 %v923
        %1106 = vmatmul.mubr.bf16.gmra.mxu0 %v922
        %v1107 = vpop.f32.mrf.mxu0
        %v1108 = vadd.f32 %v975, %v1107
        %v1109 = vpop.f32.mrf.mxu0
        %v1110 = vpop.f32.mrf.mxu0
        %v1111 = vadd.f32 %v975, %v1110
        %v1112 = vpop.f32.mrf.mxu0
        %1113 = vmatprep.mubr.bf16.mxu0 %v925
        %1114 = vmatmul.mubr.bf16.gmra.mxu0 %v924
        %v1115 = vpop.f32.mrf.mxu0
        %v1116 = vadd.f32 %v975, %v1115
        %v1117 = vpop.f32.mrf.mxu0
        %v1118 = vpop.f32.mrf.mxu0
        %v1119 = vadd.f32 %v975, %v1118
        %v1120 = vpop.f32.mrf.mxu0
        %1121 = vmatprep.mubr.bf16.mxu0 %v927
        %1122 = vmatmul.mubr.bf16.gmra.mxu0 %v926
        %v1123 = vpop.f32.mrf.mxu0
        %v1124 = vadd.f32 %v975, %v1123
        %v1125 = vpop.f32.mrf.mxu0
        %v1126 = vpop.f32.mrf.mxu0
        %v1127 = vadd.f32 %v975, %v1126
        %v1128 = vpop.f32.mrf.mxu0
        %1129 = vmatprep.mubr.bf16.mxu0 %v929
        %1130 = vmatmul.mubr.bf16.gmra.mxu0 %v928
        %v1131 = vpop.f32.mrf.mxu0
        %v1132 = vadd.f32 %v975, %v1131
        %v1133 = vpop.f32.mrf.mxu0
        %v1134 = vpop.f32.mrf.mxu0
        %v1135 = vadd.f32 %v975, %v1134
        %v1136 = vpop.f32.mrf.mxu0
        %1137 = vmatprep.mubr.bf16.mxu0 %v931
        %1138 = vmatmul.mubr.bf16.gmra.mxu0 %v930
        %v1139 = vpop.f32.mrf.mxu0
        %v1140 = vadd.f32 %v975, %v1139
        %v1141 = vpop.f32.mrf.mxu0
        %v1142 = vpop.f32.mrf.mxu0
        %v1143 = vadd.f32 %v975, %v1142
        %v1144 = vpop.f32.mrf.mxu0
        %1145 = vmatprep.mubr.bf16.mxu0 %v933
        %1146 = vmatmul.mubr.bf16.gmra.mxu0 %v932
        %v1147 = vpop.f32.mrf.mxu0
        %v1148 = vadd.f32 %v975, %v1147
        %v1149 = vpop.f32.mrf.mxu0
        %v1150 = vpop.f32.mrf.mxu0
        %v1151 = vadd.f32 %v975, %v1150
        %v1152 = vpop.f32.mrf.mxu0
        %1153 = vmatprep.mubr.bf16.mxu0 %v935
        %1154 = vmatmul.mubr.bf16.gmra.mxu0 %v934
        %v1155 = vpop.f32.mrf.mxu0
        %v1156 = vadd.f32 %v975, %v1155
        %v1157 = vpop.f32.mrf.mxu0
        %v1158 = vpop.f32.mrf.mxu0
        %v1159 = vadd.f32 %v975, %v1158
        %v1160 = vpop.f32.mrf.mxu0
        %1161 = vmatprep.mubr.bf16.mxu0 %v937
        %1162 = vmatmul.mubr.bf16.gmra.mxu0 %v936
        %v1163 = vpop.f32.mrf.mxu0
        %v1164 = vadd.f32 %v975, %v1163
        %v1165 = vpop.f32.mrf.mxu0
        %v1166 = vpop.f32.mrf.mxu0
        %v1167 = vadd.f32 %v975, %v1166
        %v1168 = vpop.f32.mrf.mxu0
        %1169 = vdwg.mxu0
        %v1170 = vtanh.pop %v1108
        %v1171 = vtanh.pop %v1111
        %v1172 = vtanh.pop %v1116
        %v1173 = vtanh.pop %v1119
        %v1174 = vtanh.pop %v1124
        %v1175 = vtanh.pop %v1127
        %v1176 = vtanh.pop %v1132
        %v1177 = vtanh.pop %v1135
        %v1178 = vtanh.pop %v1140
        %v1179 = vtanh.pop %v1143
        %v1180 = vtanh.pop %v1148
        %v1181 = vtanh.pop %v1151
        %v1182 = vtanh.pop %v1156
        %v1183 = vtanh.pop %v1159
        %v1184 = vtanh.pop %v1164
        %v1185 = vtanh.pop %v1167
        %v1186 = vpack.c.bf16 %v1171, %v1170
        %v1187 = vpack.c.bf16 %v1173, %v1172
        %v1188 = vpack.c.bf16 %v1175, %v1174
        %v1189 = vpack.c.bf16 %v1177, %v1176
        %v1190 = vpack.c.bf16 %v1179, %v1178
        %v1191 = vpack.c.bf16 %v1181, %v1180
        %v1192 = vpack.c.bf16 %v1183, %v1182
        %v1193 = vpack.c.bf16 %v1185, %v1184
        %v1202 = vunpack.c.l.b16 %v1186
        %v1203 = vunpack.c.h.b16 %v1186
        %v1204 = vunpack.c.l.b16 %v1187
        %v1205 = vunpack.c.h.b16 %v1187
        %v1206 = vunpack.c.l.b16 %v1188
        %v1207 = vunpack.c.h.b16 %v1188
        %v1208 = vunpack.c.l.b16 %v1189
        %v1209 = vunpack.c.h.b16 %v1189
        %v1210 = vunpack.c.l.b16 %v1190
        %v1211 = vunpack.c.h.b16 %v1190
        %v1212 = vunpack.c.l.b16 %v1191
        %v1213 = vunpack.c.h.b16 %v1191
        %v1214 = vunpack.c.l.b16 %v1192
        %v1215 = vunpack.c.h.b16 %v1192
        %v1216 = vunpack.c.l.b16 %v1193
        %v1217 = vunpack.c.h.b16 %v1193
        %v1218 = vpack.c.b16 %v1202, %v1202
        %v1219 = vpack.c.b16 %v1203, %v1203
        %v1220 = vpack.c.b16 %v1204, %v1204
        %v1221 = vpack.c.b16 %v1205, %v1205
        %v1222 = vpack.c.b16 %v1206, %v1206
        %v1223 = vpack.c.b16 %v1207, %v1207
        %v1224 = vpack.c.b16 %v1208, %v1208
        %v1225 = vpack.c.b16 %v1209, %v1209
        %v1226 = vpack.c.b16 %v1210, %v1210
        %v1227 = vpack.c.b16 %v1211, %v1211
        %v1228 = vpack.c.b16 %v1212, %v1212
        %v1229 = vpack.c.b16 %v1213, %v1213
        %v1230 = vpack.c.b16 %v1214, %v1214
        %v1231 = vpack.c.b16 %v1215, %v1215
        %v1232 = vpack.c.b16 %v1216, %v1216
        %v1233 = vpack.c.b16 %v1217, %v1217
        %1250 = vst [vmem:[%s295] sm:$0xf] %v1218
        %1251 = vst [vmem:[%s295 + $0x4] sm:$0xf] %v1219
        %1252 = vst [vmem:[%s295 + $0x8] sm:$0xf] %v1220
        %1253 = vst [vmem:[%s295 + $0xc] sm:$0xf] %v1221
        %1254 = vst [vmem:[%s295 + $0x10] sm:$0xf] %v1222
        %1255 = vst [vmem:[%s295 + $0x14] sm:$0xf] %v1223
        %1256 = vst [vmem:[%s295 + $0x18] sm:$0xf] %v1224
        %1257 = vst [vmem:[%s295 + $0x1c] sm:$0xf] %v1225
        %1258 = vst [vmem:[%s295 + $0x20] sm:$0xf] %v1226
        %1259 = vst [vmem:[%s295 + $0x24] sm:$0xf] %v1227
        %1260 = vst [vmem:[%s295 + $0x28] sm:$0xf] %v1228
        %1261 = vst [vmem:[%s295 + $0x2c] sm:$0xf] %v1229
        %1262 = vst [vmem:[%s295 + $0x30] sm:$0xf] %v1230
        %1263 = vst [vmem:[%s295 + $0x34] sm:$0xf] %v1231
        %1264 = vst [vmem:[%s295 + $0x38] sm:$0xf] %v1232
        %1265 = vst [vmem:[%s295 + $0x3c] sm:$0xf] %v1233
        %s1266 = smul.u32 16, %s19
        %p1267 = scmp.lt.s32.totalorder %s1266, 31
        %s1268 = scalar_select %p1267, %s1266, 31
        %s1269 = smul.addr %s1268, 4
        %s1270 = scalar_lea.vmem %s7, %s1269
        // Predicated region
        $region53: #{actor_forward.1} parent=47 // pred_check
          %p1271 = pneg %p189
        $region54: #{actor_forward.1} parent=47 // pred_check_branch
          %1273 = sbr.rel (%p1271) target = $region56
        $region55: #{actor_forward.1} parent=47 // pred_region
          %s1274 = smul.u32 16, %s19
        $region56: #{actor_forward.1} parent=47 // pred_fallthru
          _
      $region48: #{actor_forward.1} parent=5 // pred_fallthru
        _
      %p1275 = scmp.le.s32.totalorder 2, %s14
      // Predicated region
      $region57: #{actor_forward.1} parent=5 // pred_check
        %p1276 = pneg %p1275
      $region58: #{actor_forward.1} parent=5 // pred_check_branch
        %1278 = sbr.rel (%p1276) target = $region60
      $region59: #{actor_forward.1} parent=5 // pred_region
        %s1279 = ssub.s32 %s14, 2
        // Predicated region
        $region61: #{actor_forward.1} parent=59 // pred_check
          %p1280 = pneg %p195
        $region62: #{actor_forward.1} parent=59 // pred_check_branch
          %1282 = sbr.rel (%p1280) target = $region64
        $region63: #{actor_forward.1} parent=59 // pred_region
          %s1283 = smul.u32 16, %s20
          %p1284 = scmp.lt.s32.totalorder %s1283, 31
          %s1285 = scalar_select %p1284, %s1283, 31
          %s1286 = smul.addr %s1285, 4
          %s1287 = scalar_lea.vmem %s7, %s1286
        $region64: #{actor_forward.1} parent=59 // pred_fallthru
          _
      $region60: #{actor_forward.1} parent=5 // pred_fallthru
        _
    $region6: #{actor_forward.1} parent=1 // loop_footer
      %s18 = sadd.s32 1, %s14
    $region7: #{actor_forward.1} parent=1 // loop_footer_branch
      %13 = sbr.rel target = $region3
    $region8: #{actor_forward.1} parent=1 // loop_exit
      _
    %1288 = vsyncpa [#allocation3], 1
    %s1289 = scalar_lea.sflag [#allocation3], 1
    %1290 = vsyncpa %s1289, 1

</llo_original>
